<compile_context>
chip_gen: v7x
topology: tpu7x:2x2x1
jax: 0.10.0
libtpu: 0.0.40
codegen_flags: <defaults>
</compile_context>

<pallas_src>
import jax
import jax.numpy as jnp
from jax.experimental import pallas as pl
from jax.experimental.pallas import tpu as pltpu


_LANES = 128
_TARGET_BLOCK_BYTES = 8 * 1024 * 1024   # per pipelined buffer (dtype-invariant)
_MIN_GRID_STEPS = 4                     # keep both v7x TensorCores fed on mid-size tensors
_VMEM_LIMIT_BYTES = 48 * 1024 * 1024    # 4 x 8 MiB buffers + headroom; < 64 MiB v7x physical


def _round_up(a: int, b: int) -> int:
    return ((a + b - 1) // b) * b


def _scale_kernel(beta_ref, x_ref, o_ref):
    beta = beta_ref[0]          # f32 scalar, prefetched into SMEM before the grid runs
    x = x_ref[...]
    if (o_ref.dtype == x_ref.dtype
            and jnp.issubdtype(x_ref.dtype, jnp.floating)
            and x_ref.dtype != jnp.float32):
        # bf16/f16: multiply in native dtype (halves VALU work, no pack/unpack on v6e/v7x).
        o_ref[...] = x * beta.astype(x_ref.dtype)
    else:
        # f32 path (no-op casts) and int->f32 promotion path.
        o_ref[...] = (x.astype(jnp.float32) * beta).astype(o_ref.dtype)


def _momentum_net_side_impl(x: jax.Array, beta_arr: jax.Array) -> jax.Array:
    orig_shape = x.shape
    in_dtype = x.dtype
    # Match torch promotion: float stays in its dtype, int/bool * python-float -> float32.
    out_dtype = in_dtype if jnp.issubdtype(in_dtype, jnp.floating) else jnp.float32

    n = x.size
    if n == 0:
        return jnp.zeros(orig_shape, out_dtype)

    in_itemsize = jnp.dtype(in_dtype).itemsize
    out_itemsize = jnp.dtype(out_dtype).itemsize
    sub = max(8, 32 // min(in_itemsize, out_itemsize))   # dtype-packed sublane quantum

    compiler_params = pltpu.CompilerParams(
        dimension_semantics=("parallel",),
        vmem_limit_bytes=_VMEM_LIMIT_BYTES,
    )

    if n % _LANES == 0:
        # Fast path: free (contiguous) reshape to a lane-dense (rows, 128) slab. No padding.
        rows = n // _LANES
        x2d = x.reshape(rows, _LANES)

        # ~8 MiB blocks regardless of dtype; shrink so the grid has >= _MIN_GRID_STEPS steps
        # when the tensor is large enough (v7x megacore sharding of the "parallel" axis).
        target_rows = max(sub, _TARGET_BLOCK_BYTES // (_LANES * max(in_itemsize, out_itemsize)))
        rows_per_step = _round_up(pl.cdiv(rows, _MIN_GRID_STEPS), sub)
        block_rows = min(_round_up(target_rows, sub), rows_per_step)
        grid = (pl.cdiv(rows, block_rows),)   # boundary block is clipped by Pallas

        out2d = pl.pallas_call(
            _scale_kernel,
            out_shape=jax.ShapeDtypeStruct((rows, _LANES), out_dtype),
            grid_spec=pltpu.PrefetchScalarGridSpec(
                num_scalar_prefetch=1,
                grid=grid,
                in_specs=[pl.BlockSpec((block_rows, _LANES), lambda i, beta: (i, 0))],
                out_specs=pl.BlockSpec((block_rows, _LANES), lambda i, beta: (i, 0)),
            ),
            compiler_params=compiler_params,
        )(beta_arr, x2d)
        return out2d.reshape(orig_shape)

    # Unaligned fallback (n % 128 != 0): view as (1, n) and let Pallas clip/mask the last
    # partial lane-block instead of materializing padded copies (saves ~2 full HBM passes).
    x2d = x.reshape(1, n)
    max_cols = 2048 * _LANES   # 1 MiB f32 of payload per block (kept modest: 1-sublane blocks)
    cols_per_step = _round_up(pl.cdiv(n, _MIN_GRID_STEPS), _LANES)
    block_cols = min(max_cols, cols_per_step)
    grid = (pl.cdiv(n, block_cols),)

    out2d = pl.pallas_call(
        _scale_kernel,
        out_shape=jax.ShapeDtypeStruct((1, n), out_dtype),
        grid_spec=pltpu.PrefetchScalarGridSpec(
            num_scalar_prefetch=1,
            grid=grid,
            in_specs=[pl.BlockSpec((1, block_cols), lambda i, beta: (0, i))],
            out_specs=pl.BlockSpec((1, block_cols), lambda i, beta: (0, i)),
        ),
        compiler_params=compiler_params,
    )(beta_arr, x2d)
    return out2d.reshape(orig_shape)


@jax.jit
def momentum_net_side(x: jax.Array, beta) -> jax.Array:
    """MomentumNetSide.forward: x * beta with a Pallas TPU kernel (beta is a runtime scalar)."""
    beta_arr = jnp.asarray(beta, jnp.float32).reshape(1)
    return _momentum_net_side_impl(x, beta_arr)


if __name__ == "__main__":
    beta = 0.9

    # Primary test: NCHW f32, lane-aligned (2*4*16*16 = 2048 elements).
    x = jax.random.normal(jax.random.PRNGKey(0), (2, 4, 16, 16), dtype=jnp.float32)
    out = jax.block_until_ready(momentum_net_side(x, beta))
    expected = x * jnp.float32(beta)
    assert out.shape == x.shape and out.dtype == x.dtype
    assert jnp.allclose(out, expected, atol=1e-6, rtol=1e-6)

    # bf16 input exercises the native-dtype multiply path.
    xb = jax.random.normal(jax.random.PRNGKey(1), (2, 4, 16, 16), dtype=jnp.bfloat16)
    outb = jax.block_until_ready(momentum_net_side(xb, beta))
    expb = (xb.astype(jnp.float32) * jnp.float32(beta)).astype(jnp.bfloat16)
    assert outb.shape == xb.shape and outb.dtype == xb.dtype
    assert jnp.allclose(outb.astype(jnp.float32), expb.astype(jnp.float32), atol=2e-2, rtol=2e-2)

    # Non-128-aligned element count (3*5*7 = 105) exercises the pad-free clipped path.
    xu = jax.random.normal(jax.random.PRNGKey(2), (3, 5, 7), dtype=jnp.float32)
    outu = jax.block_until_ready(momentum_net_side(xu, beta))
    expu = xu * jnp.float32(beta)
    assert outu.shape == xu.shape and outu.dtype == xu.dtype
    assert jnp.allclose(outu, expu, atol=1e-6, rtol=1e-6)

    print("KERNEL_OK")
</pallas_src>

<mosaic_0001>
module attributes {stable_mosaic.version = 11 : i64} {
  func.func @_scale_kernel(%arg0: i32, %arg1: memref<1xf32, #tpu.memory_space<smem>>, %arg2: memref<8x128xf32, #tpu.memory_space<vmem>>, %arg3: memref<8x128xf32, #tpu.memory_space<vmem>>) attributes {dimension_semantics = [#tpu.dimension_semantics<parallel>], iteration_bounds = array<i64: 2>, scalar_prefetch = 1 : i64, scratch_operands = 0 : i64, tpu.core_type = #tpu.core_type<tc>, window_params = [{transform_indices = @transform_0, window_bounds = array<i64: 8, 128>}, {transform_indices = @transform_1, window_bounds = array<i64: 8, 128>}]} {
    %c0 = arith.constant 0 : index
    %0 = memref.load %arg1[%c0] : memref<1xf32, #tpu.memory_space<smem>>
    %c0_0 = arith.constant 0 : index
    %c0_1 = arith.constant 0 : index
    %1 = vector.load %arg2[%c0_0, %c0_1] : memref<8x128xf32, #tpu.memory_space<vmem>>, vector<8x128xf32>
    %2 = vector.broadcast %0 : f32 to vector<8x128xf32>
    %3 = arith.mulf %1, %2 : vector<8x128xf32>
    %c0_2 = arith.constant 0 : index
    %c0_3 = arith.constant 0 : index
    %4 = vector.load %arg3[%c0_2, %c0_3] : memref<8x128xf32, #tpu.memory_space<vmem>>, vector<8x128xf32>
    tpu.vector_store %arg3[%c0_2, %c0_3], %3 {strides = array<i32>} : memref<8x128xf32, #tpu.memory_space<vmem>>, vector<8x128xf32>,
    return
  }
  func.func @transform_0(%arg0: i32, %arg1: memref<1xf32, #tpu.memory_space<smem>>) -> (i32, i32) {
    %c0_i32 = arith.constant 0 : i32
    %c0_i32_0 = arith.constant 0 : i32
    return %arg0, %c0_i32 : i32, i32
  }
  func.func @transform_1(%arg0: i32, %arg1: memref<1xf32, #tpu.memory_space<smem>>) -> (i32, i32) {
    %c0_i32 = arith.constant 0 : i32
    %c0_i32_0 = arith.constant 0 : i32
    return %arg0, %c0_i32 : i32, i32
  }
}

</mosaic_0001>

<llo_original>
// kernel: momentum_net_side.1
$region0: #{momentum_net_side.1}
  #allocation0 [shape = 'u32[]', space=smem, size = 0x4, offset = 0x4, fixed_abs, tag = 'smem constant byte address 0x4 - core index']
  #allocation1 [shape = 'u32[144,128]{1,0:T(1,128)}', space=vmem, size = 0x12000, scoped, tag = 'internal scratch']
  #allocation2 [shape = 's32[1]{0}', space=sflag, size = 0x4, scoped, tag = 'scoped memory for momentum_net_side.1']
  #allocation3 [shape = 'f32[1]{0:T(128)S(6)}', space=smem, size = 0x200, scoped, tag = 'prefetched SMEM operand 0']
  %s0 = inlined_call_operand.<no memory space> [shape: f32[1], index: 0, kind: input, shape index: {}]
  %s1 = inlined_call_operand.vmem [shape: f32[16,128], index: 1, kind: input, shape index: {}]
  %s2 = inlined_call_operand.vmem [shape: f32[16,128], index: 2, kind: output, shape index: {}]
  %s3 = sld [smem:[#allocation0]]
  $region37: #{momentum_net_side.1} parent=0
    _
  %s5 = ssub.s32 1, %s3
  %s6 = scalar_select 0, %s5, %s3
  %7 = sst [smem:[#allocation3]] %s0
  loop: start=0, step=1, limit=4
  $region2: #{momentum_net_side.1} parent=0 // loop_pre_header
    _
  $region3: #{momentum_net_side.1} parent=0 // loop_header
    %s9 = sphi 0, %s13
    %p10 = scmp.ge.s32.totalorder %s9, 4
    %s19 = sphi 0, %s21
    %s22 = sphi 0, %s19
    %s23 = sphi 0, %s22
    %s39 = sphi 0, %s23
    %s45 = sphi 0, %s47
    %s48 = sphi 0, %s45
    %s49 = sphi 0, %s48
    %s65 = sphi 0, %s49
  $region4: #{momentum_net_side.1} parent=0 // loop_header_branch
    %12 = sbr.rel (%p10) target = $region8
  $region5: #{momentum_net_side.1} parent=0 // loop_body
    %s14 = ssub.s32 %s9, 1
    %s15 = ssub.s32 %s9, 2
    %s16 = sadd.s32 %s9, 1
    %s17 = ssub.s32 %s9, %s16
    %p18 = scmp.eq.s32.totalorder %s17, 0
    %s20 = sadd.s32 %s19, 1
    %s21 = scalar_select %p18, %s19, %s20
    %p24 = pneg %p18
    %p25 = scmp.eq.s32.totalorder %s9, 1
    %p26 = por %p24, %p25
    %p27 = scmp.ne.s32.totalorder %s19, %s22
    %p28 = scmp.eq.s32.totalorder %s9, 0
    %p29 = por %p27, %p28
    %p30 = scmp.ne.s32.totalorder %s19, %s22
    %p31 = scmp.eq.s32.totalorder %s14, 1
    %p32 = por %p30, %p31
    %p33 = scmp.ne.s32.totalorder %s22, %s23
    %p34 = scmp.eq.s32.totalorder %s14, 0
    %p35 = por %p33, %p34
    %p36 = scmp.ne.s32.totalorder %s22, %s23
    %p37 = scmp.eq.s32.totalorder %s15, 1
    %p38 = por %p36, %p37
    %p40 = scmp.ne.s32.totalorder %s23, %s39
    %p41 = scmp.eq.s32.totalorder %s15, 0
    %p42 = por %p40, %p41
    %s43 = ssub.s32 %s9, %s16
    %p44 = scmp.eq.s32.totalorder %s43, 0
    %s46 = sadd.s32 %s45, 1
    %s47 = scalar_select %p44, %s45, %s46
    %p50 = pneg %p44
    %p51 = scmp.eq.s32.totalorder %s9, 1
    %p52 = por %p50, %p51
    %p53 = scmp.ne.s32.totalorder %s45, %s48
    %p54 = scmp.eq.s32.totalorder %s9, 0
    %p55 = por %p53, %p54
    %p56 = scmp.ne.s32.totalorder %s45, %s48
    %p57 = scmp.eq.s32.totalorder %s14, 1
    %p58 = por %p56, %p57
    %p59 = scmp.ne.s32.totalorder %s48, %s49
    %p60 = scmp.eq.s32.totalorder %s14, 0
    %p61 = por %p59, %p60
    %p62 = scmp.ne.s32.totalorder %s48, %s49
    %p63 = scmp.eq.s32.totalorder %s15, 1
    %p64 = por %p62, %p63
    %p66 = scmp.ne.s32.totalorder %s49, %s65
    %p67 = scmp.eq.s32.totalorder %s15, 0
    %p68 = por %p66, %p67
    %p69 = scmp.le.s32.totalorder 1, %s9
    %p70 = scmp.lt.s32.totalorder %s9, 3
    %p71 = pnand %p69, %p70
    %p72 = pneg %p71
    // Predicated region
    $region9: #{momentum_net_side.1} parent=5 // pred_check
      _
    $region10: #{momentum_net_side.1} parent=5 // pred_check_branch
      %74 = sbr.rel (%p71) target = $region12
    $region11: #{momentum_net_side.1} parent=5 // pred_region
      %s75 = ssub.s32 %s9, 1
    $region12: #{momentum_net_side.1} parent=5 // pred_fallthru
      _
    %p76 = scmp.lt.s32.totalorder %s9, 2
    // Predicated region
    $region13: #{momentum_net_side.1} parent=5 // pred_check
      %p77 = pneg %p76
    $region14: #{momentum_net_side.1} parent=5 // pred_check_branch
      %79 = sbr.rel (%p77) target = $region16
    $region15: #{momentum_net_side.1} parent=5 // pred_region
      // Predicated region
      $region17: #{momentum_net_side.1} parent=15 // pred_check
        %p80 = pneg %p29
      $region18: #{momentum_net_side.1} parent=15 // pred_check_branch
        %82 = sbr.rel (%p80) target = $region20
      $region19: #{momentum_net_side.1} parent=15 // pred_region
        %p83 = scmp.lt.s32.totalorder %s9, 1
        %s84 = scalar_select %p83, %s9, 1
        %s85 = smul.addr %s84, 8
        %s86 = scalar_lea.vmem %s1, %s85
      $region20: #{momentum_net_side.1} parent=15 // pred_fallthru
        _
    $region16: #{momentum_net_side.1} parent=5 // pred_fallthru
      _
    %p87 = scmp.le.s32.totalorder 1, %s9
    %p88 = scmp.lt.s32.totalorder %s9, 3
    %p89 = pnand %p87, %p88
    %p90 = pneg %p89
    // Predicated region
    $region21: #{momentum_net_side.1} parent=5 // pred_check
      _
    $region22: #{momentum_net_side.1} parent=5 // pred_check_branch
      %92 = sbr.rel (%p89) target = $region24
    $region23: #{momentum_net_side.1} parent=5 // pred_region
      %s93 = ssub.s32 %s9, 1
      %p94 = scmp.lt.s32.totalorder %s14, 1
      %s95 = scalar_select %p94, %s14, 1
      %s96 = smul.addr %s95, 8
      %s97 = scalar_lea.vmem %s1, %s96
      %p98 = pneg %p35
      %p99 = pneg %p32
      %p100 = pneg %p61
      %p101 = pneg %p58
      %p102 = scmp.lt.s32.totalorder %s14, 1
      %s103 = scalar_select %p102, %s14, 1
      %s104 = smul.addr %s103, 8
      %s105 = scalar_lea.vmem %s2, %s104
      %p106 = scmp.lt.s32.totalorder %s14, 1
      %s107 = scalar_select %p106, %s14, 1
      %s108 = smul.addr %s107, 8
      %s109 = scalar_lea.vmem %s1, %s108
      %p110 = scmp.lt.s32.totalorder %s14, 1
      %s111 = scalar_select %p110, %s14, 1
      %s112 = smul.addr %s111, 8
      %s113 = scalar_lea.vmem %s2, %s112
      %s114 = sld [smem:[#allocation3]]
      %v115 = vld [vmem:[%s109] sm:$0xff]
      %v116 = vstv %s114
      %v117 = vmul.f32 %v115, %v116
      %118 = vst [vmem:[%s113] sm:$0xff] %v117
      %p119 = scmp.lt.s32.totalorder %s14, 1
      %s120 = scalar_select %p119, %s14, 1
      %s121 = smul.addr %s120, 8
      %s122 = scalar_lea.vmem %s2, %s121
      // Predicated region
      $region25: #{momentum_net_side.1} parent=23 // pred_check
        %p123 = pneg %p58
      $region26: #{momentum_net_side.1} parent=23 // pred_check_branch
        %125 = sbr.rel (%p123) target = $region28
      $region27: #{momentum_net_side.1} parent=23 // pred_region
        _
      $region28: #{momentum_net_side.1} parent=23 // pred_fallthru
        _
    $region24: #{momentum_net_side.1} parent=5 // pred_fallthru
      _
    %p126 = scmp.le.s32.totalorder 2, %s9
    // Predicated region
    $region29: #{momentum_net_side.1} parent=5 // pred_check
      %p127 = pneg %p126
    $region30: #{momentum_net_side.1} parent=5 // pred_check_branch
      %129 = sbr.rel (%p127) target = $region32
    $region31: #{momentum_net_side.1} parent=5 // pred_region
      %s130 = ssub.s32 %s9, 2
      // Predicated region
      $region33: #{momentum_net_side.1} parent=31 // pred_check
        %p131 = pneg %p64
      $region34: #{momentum_net_side.1} parent=31 // pred_check_branch
        %133 = sbr.rel (%p131) target = $region36
      $region35: #{momentum_net_side.1} parent=31 // pred_region
        %p134 = scmp.lt.s32.totalorder %s15, 1
        %s135 = scalar_select %p134, %s15, 1
        %s136 = smul.addr %s135, 8
        %s137 = scalar_lea.vmem %s2, %s136
      $region36: #{momentum_net_side.1} parent=31 // pred_fallthru
        _
    $region32: #{momentum_net_side.1} parent=5 // pred_fallthru
      _
  $region6: #{momentum_net_side.1} parent=0 // loop_footer
    %s13 = sadd.s32 1, %s9
  $region7: #{momentum_net_side.1} parent=0 // loop_footer_branch
    %8 = sbr.rel target = $region3
  $region8: #{momentum_net_side.1} parent=0 // loop_exit
    _

</llo_original>
